<compile_context>
chip_gen: v6e
topology: v6e:2x2x1
jax: 0.10.0
libtpu: 0.0.40
codegen_flags: <defaults>
</compile_context>

<pallas_src>
import functools

import jax
import jax.numpy as jnp
from jax import lax
from jax.experimental import pallas as pl
from jax.experimental.pallas import tpu as pltpu


def _channel_attention_kernel(x_ref, w1t_ref, w2t_ref, o_ref, acc_ref, *,
                              hw, hw_tile, k_steps, valid_last):
    # x_ref:   (b_tile, C, hw_tile)  native dtype, VMEM
    # w1t_ref: (C, hid)              f32, VMEM (resident)
    # w2t_ref: (hid, C)              f32, VMEM (resident)
    # o_ref:   (b_tile, C)           output dtype
    # acc_ref: (b_tile, C, 128)      f32 scratch (lane-wide partial sums)
    k = pl.program_id(1)
    last = k_steps - 1

    @pl.when(k == 0)
    def _init():
        acc_ref[...] = jnp.zeros_like(acc_ref)

    def _accumulate(valid):
        # `valid` is a static python int: number of in-bounds lanes this step.
        # Chunks fully past `valid` are skipped statically; at most one chunk
        # needs a lane mask, built from a single hoisted (1,1,128) iota.
        n_ch = -(-valid // 128)
        lane = None
        chunks = []
        for c in range(n_ch):
            lo = c * 128
            chunk = x_ref[:, :, lo:lo + 128].astype(jnp.float32)
            if valid - lo < 128:
                if lane is None:
                    lane = lax.broadcasted_iota(jnp.int32, (1, 1, 128), 2)
                chunk = jnp.where(lane < (valid - lo), chunk, 0.0)
            chunks.append(chunk)
        # Tree-sum in registers -> a single accumulator read-modify-write.
        while len(chunks) > 1:
            nxt = []
            for i in range(0, len(chunks) - 1, 2):
                nxt.append(chunks[i] + chunks[i + 1])
            if len(chunks) % 2:
                nxt.append(chunks[-1])
            chunks = nxt
        acc_ref[...] += chunks[0]

    if valid_last == hw_tile:
        # H*W divides evenly into tiles: every step takes the unmasked path.
        _accumulate(hw_tile)
    elif k_steps == 1:
        # Single reduction step; only the (statically known) tail exists.
        _accumulate(valid_last)
    else:
        @pl.when(k == last)
        def _tail():
            _accumulate(valid_last)

        @pl.when(k != last)
        def _body():
            _accumulate(hw_tile)

    @pl.when(k == last)
    def _epilogue():
        # Single cross-lane reduce, then the (tiny) SE matmuls, all in f32.
        avg = jnp.sum(acc_ref[...], axis=-1) / float(hw)                 # (b_tile, C)
        h = jnp.dot(avg, w1t_ref[...], preferred_element_type=jnp.float32)
        h = jnp.maximum(h, 0.0)
        out = jnp.dot(h, w2t_ref[...], preferred_element_type=jnp.float32)
        o_ref[...] = jax.nn.sigmoid(out).astype(o_ref.dtype)


def channel_attention(x, w1, w2, *, hw_tile=None, b_tile=None):
    """x: (B, C, H, W); w1: (C//r, C, 1, 1); w2: (C, C//r, 1, 1) -> (B, C, 1, 1)."""
    B, C, H, W = x.shape
    hid = w1.shape[0]
    HW = H * W

    # Contiguous reshape (free); keep native dtype — upcast happens per-tile in
    # the kernel so we don't pay an extra full HBM pass for astype.
    x_r = x.reshape(B, C, HW)

    # 1x1 conv weights are (out, in, 1, 1); squeeze + pre-transpose so the
    # kernel does plain (B, in) @ (in, out) matmuls. Tiny, so f32 is free.
    w1_t = jnp.transpose(w1.reshape(hid, C)).astype(jnp.float32)   # (C, hid)
    w2_t = jnp.transpose(w2.reshape(C, hid)).astype(jnp.float32)   # (hid, C)

    itemsize = jnp.dtype(x.dtype).itemsize

    # ---- batch tile: multiple of 8 (sublane) or equal to B -----------------
    if b_tile is None:
        b_tile = B if B <= 8 else 8
    else:
        b_tile = min(int(b_tile), B)
        if b_tile != B and b_tile % 8 != 0:
            b_tile = min(B, max(8, ((b_tile + 7) // 8) * 8))
            if b_tile != B and b_tile % 8 != 0:
                b_tile = B if B <= 8 else 8

    # ---- VMEM budget (real footprint, ~75% of physical capacity) -----------
    try:
        vmem_cap = int(pltpu.get_tpu_info().vmem_capacity_bytes)
    except Exception:
        vmem_cap = 64 * 1024 * 1024  # conservative (v7x per-TC)
    vmem_budget = int(0.75 * vmem_cap)

    def _footprint(hwt):
        inp = 2 * b_tile * C * hwt * itemsize          # double-buffered input
        wts = 2 * (2 * C * hid) * 4                    # both (tiny) weights, 2x buffered
        acc = b_tile * C * 128 * 4                     # f32 lane-wide accumulator
        outb = 2 * b_tile * C * itemsize               # double-buffered output
        return inp + wts + acc + outb

    # ---- HW tile: multiple of 128 lanes, target ~8 MiB of input per step ---
    hw_full = 128 * pl.cdiv(HW, 128)
    if hw_tile is None:
        target_bytes = 8 * 1024 * 1024
        lanes = (target_bytes // max(1, b_tile * C * itemsize)) // 128 * 128
        hw_tile = int(min(hw_full, max(128, lanes), 4096))
    else:
        # Round user-supplied tile UP to a multiple of 128 (never drop lanes).
        hw_tile = int(min(hw_full, max(128, 128 * pl.cdiv(int(hw_tile), 128))))
    # Shrink until the double-buffered footprint fits the VMEM budget.
    while hw_tile > 128 and _footprint(hw_tile) > vmem_budget:
        hw_tile -= 128

    k_steps = pl.cdiv(HW, hw_tile)
    rem = HW - (k_steps - 1) * hw_tile
    valid_last = rem if rem > 0 else hw_tile           # static lanes valid in last step

    grid = (pl.cdiv(B, b_tile), k_steps)

    vmem_limit = int(min(vmem_budget,
                         max(16 * 1024 * 1024, _footprint(hw_tile) + 4 * 1024 * 1024)))

    cost = pl.CostEstimate(
        flops=B * C * HW + 4 * B * C * hid,
        transcendentals=B * C,
        bytes_accessed=B * C * HW * itemsize + (2 * C * hid) * 4 + B * C * itemsize,
    )

    kernel = functools.partial(
        _channel_attention_kernel,
        hw=HW,
        hw_tile=hw_tile,
        k_steps=k_steps,
        valid_last=valid_last,
    )

    out = pl.pallas_call(
        kernel,
        out_shape=jax.ShapeDtypeStruct((B, C), x.dtype),
        grid_spec=pltpu.PrefetchScalarGridSpec(
            num_scalar_prefetch=0,
            grid=grid,
            in_specs=[
                pl.BlockSpec((b_tile, C, hw_tile), lambda b, k: (b, 0, k)),
                pl.BlockSpec((C, hid), lambda b, k: (0, 0)),   # resident weights
                pl.BlockSpec((hid, C), lambda b, k: (0, 0)),   # resident weights
            ],
            out_specs=pl.BlockSpec((b_tile, C), lambda b, k: (b, 0)),
            scratch_shapes=[pltpu.VMEM((b_tile, C, 128), jnp.float32)],
        ),
        compiler_params=pltpu.CompilerParams(
            dimension_semantics=("parallel", "arbitrary"),
            vmem_limit_bytes=vmem_limit,
        ),
        cost_estimate=cost,
    )(x_r, w1_t, w2_t)

    return out.reshape(B, C, 1, 1)


def channel_attention_ref(x, w1, w2):
    """Plain-JAX reference mirroring the PyTorch forward."""
    B, C, H, W = x.shape
    hid = w1.shape[0]
    avg = jnp.mean(x.astype(jnp.float32), axis=(2, 3))          # (B, C)
    h = jnp.maximum(avg @ w1.reshape(hid, C).T, 0.0)            # (B, hid)
    o = h @ w2.reshape(C, hid).T                                # (B, C)
    return jax.nn.sigmoid(o).astype(x.dtype).reshape(B, C, 1, 1)


if __name__ == "__main__":
    # Module config: channel=64, reduction=16 -> hidden = 4.
    B, C, H, W = 2, 64, 16, 16
    reduction = 16
    hid = C // reduction

    key = jax.random.PRNGKey(0)
    kx, k1, k2 = jax.random.split(key, 3)

    x = jax.random.normal(kx, (B, C, H, W), dtype=jnp.float32)
    # Deterministic synthetic weights with conv-like scale (kaiming-ish).
    w1 = jax.random.normal(k1, (hid, C, 1, 1), dtype=jnp.float32) * (2.0 / C) ** 0.5
    w2 = jax.random.normal(k2, (C, hid, 1, 1), dtype=jnp.float32) * (2.0 / hid) ** 0.5

    out = channel_attention(x, w1, w2)
    out = jax.block_until_ready(out)

    ref = channel_attention_ref(x, w1, w2)
    assert out.shape == (B, C, 1, 1)
    assert jnp.allclose(out, ref, atol=1e-5, rtol=1e-5), "mismatch vs reference"

    print("KERNEL_OK")
</pallas_src>

<mosaic_0001>
module attributes {stable_mosaic.version = 11 : i64} {
  func.func @_channel_attention_kernel(%arg0: i32, %arg1: i32, %arg2: memref<2x64x256xf32, #tpu.memory_space<vmem>>, %arg3: memref<64x4xf32, #tpu.memory_space<vmem>>, %arg4: memref<4x64xf32, #tpu.memory_space<vmem>>, %arg5: memref<2x64xf32, #tpu.memory_space<vmem>>, %arg6: memref<2x64x128xf32, #tpu.memory_space<vmem>>) attributes {dimension_semantics = [#tpu.dimension_semantics<parallel>, #tpu.dimension_semantics<arbitrary>], iteration_bounds = array<i64: 1, 1>, scalar_prefetch = 0 : i64, scratch_operands = 1 : i64, tpu.core_type = #tpu.core_type<tc>, window_params = [{transform_indices = @transform_0, window_bounds = array<i64: 2, 64, 256>}, {pipeline_mode = #tpu.pipeline_mode<synchronous>, transform_indices = @transform_1, window_bounds = array<i64: 64, 4>}, {pipeline_mode = #tpu.pipeline_mode<synchronous>, transform_indices = @transform_2, window_bounds = array<i64: 4, 64>}, {transform_indices = @transform_3, window_bounds = array<i64: 2, 64>}]} {
    %c0_i32 = arith.constant 0 : i32
    %0 = arith.cmpi eq, %arg1, %c0_i32 : i32
    %1 = arith.extui %0 : i1 to i32
    %c0_i32_0 = arith.constant 0 : i32
    %2 = arith.cmpi ne, %1, %c0_i32_0 : i32
    scf.if %2 {
      %cst = arith.constant 0.000000e+00 : f32
      %12 = vector.broadcast %cst : f32 to vector<2x64x128xf32>
      %c0_13 = arith.constant 0 : index
      %c0_14 = arith.constant 0 : index
      %c0_15 = arith.constant 0 : index
      %13 = vector.load %arg6[%c0_13, %c0_14, %c0_15] : memref<2x64x128xf32, #tpu.memory_space<vmem>>, vector<2x64x128xf32>
      tpu.vector_store %arg6[%c0_13, %c0_14, %c0_15], %12 {strides = array<i32>} : memref<2x64x128xf32, #tpu.memory_space<vmem>>, vector<2x64x128xf32>,
    } else {
    }
    %c0 = arith.constant 0 : index
    %c0_1 = arith.constant 0 : index
    %c0_2 = arith.constant 0 : index
    %3 = vector.load %arg2[%c0, %c0_1, %c0_2] : memref<2x64x256xf32, #tpu.memory_space<vmem>>, vector<2x64x128xf32>
    %c0_3 = arith.constant 0 : index
    %c0_4 = arith.constant 0 : index
    %c128 = arith.constant 128 : index
    %4 = vector.load %arg2[%c0_3, %c0_4, %c128] : memref<2x64x256xf32, #tpu.memory_space<vmem>>, vector<2x64x128xf32>
    %5 = arith.addf %3, %4 : vector<2x64x128xf32>
    %c0_5 = arith.constant 0 : index
    %c0_6 = arith.constant 0 : index
    %c0_7 = arith.constant 0 : index
    %6 = vector.load %arg6[%c0_5, %c0_6, %c0_7] : memref<2x64x128xf32, #tpu.memory_space<vmem>>, vector<2x64x128xf32>
    %7 = arith.addf %6, %5 : vector<2x64x128xf32>
    %c0_8 = arith.constant 0 : index
    %c0_9 = arith.constant 0 : index
    %c0_10 = arith.constant 0 : index
    %8 = vector.load %arg6[%c0_8, %c0_9, %c0_10] : memref<2x64x128xf32, #tpu.memory_space<vmem>>, vector<2x64x128xf32>
    tpu.vector_store %arg6[%c0_8, %c0_9, %c0_10], %7 {strides = array<i32>} : memref<2x64x128xf32, #tpu.memory_space<vmem>>, vector<2x64x128xf32>,
    %c0_i32_11 = arith.constant 0 : i32
    %9 = arith.cmpi eq, %arg1, %c0_i32_11 : i32
    %10 = arith.extui %9 : i1 to i32
    %c0_i32_12 = arith.constant 0 : i32
    %11 = arith.cmpi ne, %10, %c0_i32_12 : i32
    scf.if %11 {
      %c0_13 = arith.constant 0 : index
      %c0_14 = arith.constant 0 : index
      %c0_15 = arith.constant 0 : index
      %12 = vector.load %arg6[%c0_13, %c0_14, %c0_15] : memref<2x64x128xf32, #tpu.memory_space<vmem>>, vector<2x64x128xf32>
      %cst = arith.constant dense<0.000000e+00> : vector<2x64xf32>
      %13 = vector.multi_reduction <add>, %12, %cst [2] : vector<2x64x128xf32> to vector<2x64xf32>
      %cst_16 = arith.constant 2.560000e+02 : f32
      %14 = vector.broadcast %cst_16 : f32 to vector<2x64xf32>
      %15 = arith.divf %13, %14 : vector<2x64xf32>
      %c0_17 = arith.constant 0 : index
      %c0_18 = arith.constant 0 : index
      %16 = vector.load %arg3[%c0_17, %c0_18] : memref<64x4xf32, #tpu.memory_space<vmem>>, vector<64x4xf32>
      %cst_19 = arith.constant dense<0.000000e+00> : vector<2x4xf32>
      %17 = tpu.matmul %15, %16, %cst_19 {dimension_numbers = #tpu.dot_dimension_numbers<[1], [0], [0], [1], [0, 0, 1, 1], [], []>} : vector<2x64xf32>, vector<64x4xf32>, vector<2x4xf32> -> vector<2x4xf32>
      %cst_20 = arith.constant 0.000000e+00 : f32
      %18 = vector.broadcast %cst_20 : f32 to vector<2x4xf32>
      %19 = arith.maximumf %17, %18 : vector<2x4xf32>
      %c0_21 = arith.constant 0 : index
      %c0_22 = arith.constant 0 : index
      %20 = vector.load %arg4[%c0_21, %c0_22] : memref<4x64xf32, #tpu.memory_space<vmem>>, vector<4x64xf32>
      %cst_23 = arith.constant dense<0.000000e+00> : vector<2x64xf32>
      %21 = tpu.matmul %19, %20, %cst_23 {dimension_numbers = #tpu.dot_dimension_numbers<[1], [0], [0], [1], [0, 0, 1, 1], [], []>} : vector<2x4xf32>, vector<4x64xf32>, vector<2x64xf32> -> vector<2x64xf32>
      %22 = arith.negf %21 : vector<2x64xf32>
      %23 = math.exp %22 : vector<2x64xf32>
      %cst_24 = arith.constant 1.000000e+00 : f32
      %24 = vector.broadcast %cst_24 : f32 to vector<2x64xf32>
      %25 = arith.addf %24, %23 : vector<2x64xf32>
      %26 = arith.divf %24, %25 : vector<2x64xf32>
      %c0_25 = arith.constant 0 : index
      %c0_26 = arith.constant 0 : index
      %27 = vector.load %arg5[%c0_25, %c0_26] : memref<2x64xf32, #tpu.memory_space<vmem>>, vector<2x64xf32>
      tpu.vector_store %arg5[%c0_25, %c0_26], %26 {strides = array<i32>} : memref<2x64xf32, #tpu.memory_space<vmem>>, vector<2x64xf32>,
    } else {
    }
    return
  }
  func.func @transform_0(%arg0: i32, %arg1: i32) -> (i32, i32, i32) {
    %c0_i32 = arith.constant 0 : i32
    %c0_i32_0 = arith.constant 0 : i32
    return %arg0, %c0_i32, %arg1 : i32, i32, i32
  }
  func.func @transform_1(%arg0: i32, %arg1: i32) -> (i32, i32) {
    %c0_i32 = arith.constant 0 : i32
    %c0_i32_0 = arith.constant 0 : i32
    %c0_i32_1 = arith.constant 0 : i32
    return %c0_i32, %c0_i32_0 : i32, i32
  }
  func.func @transform_2(%arg0: i32, %arg1: i32) -> (i32, i32) {
    %c0_i32 = arith.constant 0 : i32
    %c0_i32_0 = arith.constant 0 : i32
    %c0_i32_1 = arith.constant 0 : i32
    return %c0_i32, %c0_i32_0 : i32, i32
  }
  func.func @transform_3(%arg0: i32, %arg1: i32) -> (i32, i32) {
    %c0_i32 = arith.constant 0 : i32
    %c0_i32_0 = arith.constant 0 : i32
    return %arg0, %c0_i32 : i32, i32
  }
}

</mosaic_0001>

<llo_original>
// kernel: tpu_custom_call.1
$region0: #{tpu_custom_call.1}
  #allocation0 [shape = 'u32[]', space=smem, size = 0x4, offset = 0x4, fixed_abs, tag = 'smem constant byte address 0x4 - core index']
  #allocation1 [shape = 'u32[144,128]{1,0:T(1,128)}', space=vmem, size = 0x12000, scoped, tag = 'internal scratch']
  #allocation2 [shape = 'f32[2,64,128]{2,1,0:T(8,128)}', space=vmem, size = 0x10000, scoped, tag = 'scratch operand']
  %s0 = inlined_call_operand.hbm [shape: f32[2,64,256], index: 0, kind: input, shape index: {}]
  %s1 = inlined_call_operand.vmem [shape: f32[64,4], index: 1, kind: input, shape index: {}]
  %s2 = inlined_call_operand.vmem [shape: f32[4,64], index: 2, kind: input, shape index: {}]
  %s3 = inlined_call_operand.hbm [shape: f32[2,64], index: 3, kind: output, shape index: {}]
  %s4 = sld [smem:[#allocation0]]
  $region34: #{tpu_custom_call.1} parent=0
    _
  %s6 = ssub.s32 1, %s4
  %s7 = scalar_select 0, %s6, %s4
  $region1: #{tpu_custom_call.1} parent=0
    #allocation3 [shape = 'u8[131072]{0}', space=vmem, size = 0x20000, scoped, tag = 'input window, operand 0, single buffered']
    #allocation4 [shape = 's32[1]{0}', space=sflag, size = 0x4, scoped, tag = 'scoped memory for tpu_custom_call.1']
    #allocation5 [shape = 's32[1]{0}', space=sflag, size = 0x4, scoped, tag = 'scoped memory for tpu_custom_call.1']
    #allocation6 [shape = 'u8[1024]{0}', space=vmem, size = 0x400, scoped, tag = 'output window, operand 0, single buffered']
    %8 = vsyncpa [#allocation4], 0
    %9 = vsyncpa [#allocation5], 0
    // Predicated region
    $region2: #{tpu_custom_call.1} parent=1 // pred_check
      _
    $region3: #{tpu_custom_call.1} parent=1 // pred_check_branch
      %11 = sbr.rel (0) target = $region5
    $region4: #{tpu_custom_call.1} parent=1 // pred_region
      %s13 = ssub.s32 4096, 4096
      %14 = vsyncadd [#allocation4], %s13
      %s15 = sshll.u32 [#allocation3], 4
      %s16 = int_to_ptr.vmem [resolvable:$true] %s15
      %21 = dma.hbm_to_vmem [thread:$0]  %s0, 4096, %s16, [#allocation4], 256, 256, 16
    $region5: #{tpu_custom_call.1} parent=1 // pred_fallthru
      _
    // Predicated region
    $region6: #{tpu_custom_call.1} parent=1 // pred_check
      _
    $region7: #{tpu_custom_call.1} parent=1 // pred_check_branch
      %23 = sbr.rel (0) target = $region9
    $region8: #{tpu_custom_call.1} parent=1 // pred_region
      _
    $region9: #{tpu_custom_call.1} parent=1 // pred_fallthru
      _
    // Predicated region
    $region10: #{tpu_custom_call.1} parent=1 // pred_check
      _
    $region11: #{tpu_custom_call.1} parent=1 // pred_check_branch
      %25 = sbr.rel (0) target = $region13
    $region12: #{tpu_custom_call.1} parent=1 // pred_region
      _
    $region13: #{tpu_custom_call.1} parent=1 // pred_fallthru
      _
    // Predicated region
    $region14: #{tpu_custom_call.1} parent=1 // pred_check
      _
    $region15: #{tpu_custom_call.1} parent=1 // pred_check_branch
      %27 = sbr.rel (0) target = $region17
    $region16: #{tpu_custom_call.1} parent=1 // pred_region
      %28 = dma.done [#allocation4], 4096
    $region17: #{tpu_custom_call.1} parent=1 // pred_fallthru
      _
    %p29 = scmp.eq.s32.totalorder 0, 0
    // Predicated region
    $region18: #{tpu_custom_call.1} parent=1 // pred_check
      %p30 = pneg %p29
    $region19: #{tpu_custom_call.1} parent=1 // pred_check_branch
      %32 = sbr.rel (%p30) target = $region21
    $region20: #{tpu_custom_call.1} parent=1 // pred_region
      %33 = vst [vmem:[#allocation2] sm:$0xff] 0.0
      %34 = vst [vmem:[#allocation2 + $0x8] sm:$0xff] 0.0
      %35 = vst [vmem:[#allocation2 + $0x10] sm:$0xff] 0.0
      %36 = vst [vmem:[#allocation2 + $0x18] sm:$0xff] 0.0
      %37 = vst [vmem:[#allocation2 + $0x20] sm:$0xff] 0.0
      %38 = vst [vmem:[#allocation2 + $0x28] sm:$0xff] 0.0
      %39 = vst [vmem:[#allocation2 + $0x30] sm:$0xff] 0.0
      %40 = vst [vmem:[#allocation2 + $0x38] sm:$0xff] 0.0
      %41 = vst [vmem:[#allocation2 + $0x40] sm:$0xff] 0.0
      %42 = vst [vmem:[#allocation2 + $0x48] sm:$0xff] 0.0
      %43 = vst [vmem:[#allocation2 + $0x50] sm:$0xff] 0.0
      %44 = vst [vmem:[#allocation2 + $0x58] sm:$0xff] 0.0
      %45 = vst [vmem:[#allocation2 + $0x60] sm:$0xff] 0.0
      %46 = vst [vmem:[#allocation2 + $0x68] sm:$0xff] 0.0
      %47 = vst [vmem:[#allocation2 + $0x70] sm:$0xff] 0.0
      %48 = vst [vmem:[#allocation2 + $0x78] sm:$0xff] 0.0
    $region21: #{tpu_custom_call.1} parent=1 // pred_fallthru
      _
    %v49 = vld [vmem:[#allocation3] sm:$0xff]
    %v50 = vld [vmem:[#allocation3 + $0x10] sm:$0xff]
    %v51 = vld [vmem:[#allocation3 + $0x20] sm:$0xff]
    %v52 = vld [vmem:[#allocation3 + $0x30] sm:$0xff]
    %v53 = vld [vmem:[#allocation3 + $0x40] sm:$0xff]
    %v54 = vld [vmem:[#allocation3 + $0x50] sm:$0xff]
    %v55 = vld [vmem:[#allocation3 + $0x60] sm:$0xff]
    %v56 = vld [vmem:[#allocation3 + $0x70] sm:$0xff]
    %v57 = vld [vmem:[#allocation3 + $0x80] sm:$0xff]
    %v58 = vld [vmem:[#allocation3 + $0x90] sm:$0xff]
    %v59 = vld [vmem:[#allocation3 + $0xa0] sm:$0xff]
    %v60 = vld [vmem:[#allocation3 + $0xb0] sm:$0xff]
    %v61 = vld [vmem:[#allocation3 + $0xc0] sm:$0xff]
    %v62 = vld [vmem:[#allocation3 + $0xd0] sm:$0xff]
    %v63 = vld [vmem:[#allocation3 + $0xe0] sm:$0xff]
    %v64 = vld [vmem:[#allocation3 + $0xf0] sm:$0xff]
    %v65 = vld [vmem:[#allocation3 + $0x8] sm:$0xff]
    %v66 = vld [vmem:[#allocation3 + $0x18] sm:$0xff]
    %v67 = vld [vmem:[#allocation3 + $0x28] sm:$0xff]
    %v68 = vld [vmem:[#allocation3 + $0x38] sm:$0xff]
    %v69 = vld [vmem:[#allocation3 + $0x48] sm:$0xff]
    %v70 = vld [vmem:[#allocation3 + $0x58] sm:$0xff]
    %v71 = vld [vmem:[#allocation3 + $0x68] sm:$0xff]
    %v72 = vld [vmem:[#allocation3 + $0x78] sm:$0xff]
    %v73 = vld [vmem:[#allocation3 + $0x88] sm:$0xff]
    %v74 = vld [vmem:[#allocation3 + $0x98] sm:$0xff]
    %v75 = vld [vmem:[#allocation3 + $0xa8] sm:$0xff]
    %v76 = vld [vmem:[#allocation3 + $0xb8] sm:$0xff]
    %v77 = vld [vmem:[#allocation3 + $0xc8] sm:$0xff]
    %v78 = vld [vmem:[#allocation3 + $0xd8] sm:$0xff]
    %v79 = vld [vmem:[#allocation3 + $0xe8] sm:$0xff]
    %v80 = vld [vmem:[#allocation3 + $0xf8] sm:$0xff]
    %v81 = vadd.f32 %v49, %v65
    %v82 = vadd.f32 %v50, %v66
    %v83 = vadd.f32 %v51, %v67
    %v84 = vadd.f32 %v52, %v68
    %v85 = vadd.f32 %v53, %v69
    %v86 = vadd.f32 %v54, %v70
    %v87 = vadd.f32 %v55, %v71
    %v88 = vadd.f32 %v56, %v72
    %v89 = vadd.f32 %v57, %v73
    %v90 = vadd.f32 %v58, %v74
    %v91 = vadd.f32 %v59, %v75
    %v92 = vadd.f32 %v60, %v76
    %v93 = vadd.f32 %v61, %v77
    %v94 = vadd.f32 %v62, %v78
    %v95 = vadd.f32 %v63, %v79
    %v96 = vadd.f32 %v64, %v80
    %v97 = vld [vmem:[#allocation2] sm:$0xff]
    %v98 = vld [vmem:[#allocation2 + $0x8] sm:$0xff]
    %v99 = vld [vmem:[#allocation2 + $0x10] sm:$0xff]
    %v100 = vld [vmem:[#allocation2 + $0x18] sm:$0xff]
    %v101 = vld [vmem:[#allocation2 + $0x20] sm:$0xff]
    %v102 = vld [vmem:[#allocation2 + $0x28] sm:$0xff]
    %v103 = vld [vmem:[#allocation2 + $0x30] sm:$0xff]
    %v104 = vld [vmem:[#allocation2 + $0x38] sm:$0xff]
    %v105 = vld [vmem:[#allocation2 + $0x40] sm:$0xff]
    %v106 = vld [vmem:[#allocation2 + $0x48] sm:$0xff]
    %v107 = vld [vmem:[#allocation2 + $0x50] sm:$0xff]
    %v108 = vld [vmem:[#allocation2 + $0x58] sm:$0xff]
    %v109 = vld [vmem:[#allocation2 + $0x60] sm:$0xff]
    %v110 = vld [vmem:[#allocation2 + $0x68] sm:$0xff]
    %v111 = vld [vmem:[#allocation2 + $0x70] sm:$0xff]
    %v112 = vld [vmem:[#allocation2 + $0x78] sm:$0xff]
    %v113 = vadd.f32 %v97, %v81
    %v114 = vadd.f32 %v98, %v82
    %v115 = vadd.f32 %v99, %v83
    %v116 = vadd.f32 %v100, %v84
    %v117 = vadd.f32 %v101, %v85
    %v118 = vadd.f32 %v102, %v86
    %v119 = vadd.f32 %v103, %v87
    %v120 = vadd.f32 %v104, %v88
    %v121 = vadd.f32 %v105, %v89
    %v122 = vadd.f32 %v106, %v90
    %v123 = vadd.f32 %v107, %v91
    %v124 = vadd.f32 %v108, %v92
    %v125 = vadd.f32 %v109, %v93
    %v126 = vadd.f32 %v110, %v94
    %v127 = vadd.f32 %v111, %v95
    %v128 = vadd.f32 %v112, %v96
    %129 = vst [vmem:[#allocation2] sm:$0xff] %v113
    %130 = vst [vmem:[#allocation2 + $0x8] sm:$0xff] %v114
    %131 = vst [vmem:[#allocation2 + $0x10] sm:$0xff] %v115
    %132 = vst [vmem:[#allocation2 + $0x18] sm:$0xff] %v116
    %133 = vst [vmem:[#allocation2 + $0x20] sm:$0xff] %v117
    %134 = vst [vmem:[#allocation2 + $0x28] sm:$0xff] %v118
    %135 = vst [vmem:[#allocation2 + $0x30] sm:$0xff] %v119
    %136 = vst [vmem:[#allocation2 + $0x38] sm:$0xff] %v120
    %137 = vst [vmem:[#allocation2 + $0x40] sm:$0xff] %v121
    %138 = vst [vmem:[#allocation2 + $0x48] sm:$0xff] %v122
    %139 = vst [vmem:[#allocation2 + $0x50] sm:$0xff] %v123
    %140 = vst [vmem:[#allocation2 + $0x58] sm:$0xff] %v124
    %141 = vst [vmem:[#allocation2 + $0x60] sm:$0xff] %v125
    %142 = vst [vmem:[#allocation2 + $0x68] sm:$0xff] %v126
    %143 = vst [vmem:[#allocation2 + $0x70] sm:$0xff] %v127
    %144 = vst [vmem:[#allocation2 + $0x78] sm:$0xff] %v128
    // Predicated region
    $region22: #{tpu_custom_call.1} parent=1 // pred_check
      %p145 = pneg %p29
    $region23: #{tpu_custom_call.1} parent=1 // pred_check_branch
      %147 = sbr.rel (%p145) target = $region25
    $region24: #{tpu_custom_call.1} parent=1 // pred_region
      %v148 = vld [vmem:[#allocation2] sm:$0xff]
      %v149 = vld [vmem:[#allocation2 + $0x8] sm:$0xff]
      %v150 = vld [vmem:[#allocation2 + $0x10] sm:$0xff]
      %v151 = vld [vmem:[#allocation2 + $0x18] sm:$0xff]
      %v152 = vld [vmem:[#allocation2 + $0x20] sm:$0xff]
      %v153 = vld [vmem:[#allocation2 + $0x28] sm:$0xff]
      %v154 = vld [vmem:[#allocation2 + $0x30] sm:$0xff]
      %v155 = vld [vmem:[#allocation2 + $0x38] sm:$0xff]
      %v156 = vld [vmem:[#allocation2 + $0x40] sm:$0xff]
      %v157 = vld [vmem:[#allocation2 + $0x48] sm:$0xff]
      %v158 = vld [vmem:[#allocation2 + $0x50] sm:$0xff]
      %v159 = vld [vmem:[#allocation2 + $0x58] sm:$0xff]
      %v160 = vld [vmem:[#allocation2 + $0x60] sm:$0xff]
      %v161 = vld [vmem:[#allocation2 + $0x68] sm:$0xff]
      %v162 = vld [vmem:[#allocation2 + $0x70] sm:$0xff]
      %v163 = vld [vmem:[#allocation2 + $0x78] sm:$0xff]
      %164 = vadd.xlane.f32.xlu0 %v148
      %v165 = vpop.xlane.xlu0 %164
      %166 = vadd.xlane.f32.xlu0 %v149
      %v167 = vpop.xlane.xlu0 %166
      %168 = vadd.xlane.f32.xlu0 %v150
      %v169 = vpop.xlane.xlu0 %168
      %170 = vadd.xlane.f32.xlu0 %v151
      %v171 = vpop.xlane.xlu0 %170
      %172 = vadd.xlane.f32.xlu0 %v152
      %v173 = vpop.xlane.xlu0 %172
      %174 = vadd.xlane.f32.xlu0 %v153
      %v175 = vpop.xlane.xlu0 %174
      %176 = vadd.xlane.f32.xlu0 %v154
      %v177 = vpop.xlane.xlu0 %176
      %178 = vadd.xlane.f32.xlu0 %v155
      %v179 = vpop.xlane.xlu0 %178
      %180 = vadd.xlane.f32.xlu0 %v156
      %v181 = vpop.xlane.xlu0 %180
      %182 = vadd.xlane.f32.xlu0 %v157
      %v183 = vpop.xlane.xlu0 %182
      %184 = vadd.xlane.f32.xlu0 %v158
      %v185 = vpop.xlane.xlu0 %184
      %186 = vadd.xlane.f32.xlu0 %v159
      %v187 = vpop.xlane.xlu0 %186
      %188 = vadd.xlane.f32.xlu0 %v160
      %v189 = vpop.xlane.xlu0 %188
      %190 = vadd.xlane.f32.xlu0 %v161
      %v191 = vpop.xlane.xlu0 %190
      %192 = vadd.xlane.f32.xlu0 %v162
      %v193 = vpop.xlane.xlu0 %192
      %194 = vadd.xlane.f32.xlu0 %v163
      %v195 = vpop.xlane.xlu0 %194
      %v196 = vrcp.pop 256.0
      %v197 = vmul.f32 %v165, %v196
      %v198 = vmul.f32 %v167, %v196
      %v199 = vmul.f32 %v169, %v196
      %v200 = vmul.f32 %v171, %v196
      %v201 = vmul.f32 %v173, %v196
      %v202 = vmul.f32 %v175, %v196
      %v203 = vmul.f32 %v177, %v196
      %v204 = vmul.f32 %v179, %v196
      %v205 = vmul.f32 %v181, %v196
      %v206 = vmul.f32 %v183, %v196
      %v207 = vmul.f32 %v185, %v196
      %v208 = vmul.f32 %v187, %v196
      %v209 = vmul.f32 %v189, %v196
      %v210 = vmul.f32 %v191, %v196
      %v211 = vmul.f32 %v193, %v196
      %v212 = vmul.f32 %v195, %v196
      %v213 = vld [vmem:[%s1] sm:$0xff]
      %v214 = vld [vmem:[%s1 + $0x8] sm:$0xff]
      %v215 = vld [vmem:[%s1 + $0x10] sm:$0xff]
      %v216 = vld [vmem:[%s1 + $0x18] sm:$0xff]
      %v217 = vld [vmem:[%s1 + $0x20] sm:$0xff]
      %v218 = vld [vmem:[%s1 + $0x28] sm:$0xff]
      %v219 = vld [vmem:[%s1 + $0x30] sm:$0xff]
      %v220 = vld [vmem:[%s1 + $0x38] sm:$0xff]
      %v237 = vlaneseq
      %v238 = vand.u32 %v237, 127
      %v239 = vlaneseq
      %v240 = vshrl.u32 %v239, 7
      %v241 = vsub.s32 %v238, %v240
      %v242 = vrot.slane %v197, %v241
      %v243 = vadd.s32 %v238, 4294967288
      %v244 = vlaneseq
      %v245 = vshrl.u32 %v244, 7
      %v246 = vsub.s32 %v243, %v245
      %v247 = vrot.slane %v198, %v246
      %vm248 = vcmask 130112
      %v249 = vsel %vm248, %v247, %v242
      %v250 = vadd.s32 %v238, 4294967280
      %v251 = vlaneseq
      %v252 = vshrl.u32 %v251, 7
      %v253 = vsub.s32 %v250, %v252
      %v254 = vrot.slane %v199, %v253
      %vm255 = vcmask 195712
      %v256 = vsel %vm255, %v254, %v249
      %v257 = vadd.s32 %v238, 4294967272
      %v258 = vlaneseq
      %v259 = vshrl.u32 %v258, 7
      %v260 = vsub.s32 %v257, %v259
      %v261 = vrot.slane %v200, %v260
      %vm262 = vcmask 261312
      %v263 = vsel %vm262, %v261, %v256
      %v264 = vadd.s32 %v238, 4294967264
      %v265 = vlaneseq
      %v266 = vshrl.u32 %v265, 7
      %v267 = vsub.s32 %v264, %v266
      %v268 = vrot.slane %v201, %v267
      %vm269 = vcmask 326912
      %v270 = vsel %vm269, %v268, %v263
      %v271 = vadd.s32 %v238, 4294967256
      %v272 = vlaneseq
      %v273 = vshrl.u32 %v272, 7
      %v274 = vsub.s32 %v271, %v273
      %v275 = vrot.slane %v202, %v274
      %vm276 = vcmask 392512
      %v277 = vsel %vm276, %v275, %v270
      %v278 = vadd.s32 %v238, 4294967248
      %v279 = vlaneseq
      %v280 = vshrl.u32 %v279, 7
      %v281 = vsub.s32 %v278, %v280
      %v282 = vrot.slane %v203, %v281
      %vm283 = vcmask 458112
      %v284 = vsel %vm283, %v282, %v277
      %v285 = vadd.s32 %v238, 4294967240
      %v286 = vlaneseq
      %v287 = vshrl.u32 %v286, 7
      %v288 = vsub.s32 %v285, %v287
      %v289 = vrot.slane %v204, %v288
      %vm290 = vcmask 523712
      %v291 = vsel %vm290, %v289, %v284
      %v292 = vlaneseq
      %v293 = vshrl.u32 %v292, 7
      %v294 = vsub.s32 %v238, %v293
      %v295 = vrot.slane %v205, %v294
      %v296 = vlaneseq
      %v297 = vshrl.u32 %v296, 7
      %v298 = vsub.s32 %v243, %v297
      %v299 = vrot.slane %v206, %v298
      %v300 = vsel %vm248, %v299, %v295
      %v301 = vlaneseq
      %v302 = vshrl.u32 %v301, 7
      %v303 = vsub.s32 %v250, %v302
      %v304 = vrot.slane %v207, %v303
      %v305 = vsel %vm255, %v304, %v300
      %v306 = vlaneseq
      %v307 = vshrl.u32 %v306, 7
      %v308 = vsub.s32 %v257, %v307
      %v309 = vrot.slane %v208, %v308
      %v310 = vsel %vm262, %v309, %v305
      %v311 = vlaneseq
      %v312 = vshrl.u32 %v311, 7
      %v313 = vsub.s32 %v264, %v312
      %v314 = vrot.slane %v209, %v313
      %v315 = vsel %vm269, %v314, %v310
      %v316 = vlaneseq
      %v317 = vshrl.u32 %v316, 7
      %v318 = vsub.s32 %v271, %v317
      %v319 = vrot.slane %v210, %v318
      %v320 = vsel %vm276, %v319, %v315
      %v321 = vlaneseq
      %v322 = vshrl.u32 %v321, 7
      %v323 = vsub.s32 %v278, %v322
      %v324 = vrot.slane %v211, %v323
      %v325 = vsel %vm283, %v324, %v320
      %v326 = vlaneseq
      %v327 = vshrl.u32 %v326, 7
      %v328 = vsub.s32 %v285, %v327
      %v329 = vrot.slane %v212, %v328
      %v330 = vsel %vm290, %v329, %v325
      %vm331 = vcmask 1041409
      %v332 = vsel %vm331, %v330, %v291
      %vm333 = vcmask 523264
      %v334 = vsel %vm333, %v332, 0
      %336 = vmatprep.subr.mxu0 0.0
      %337 = vmatpush1.msra.mxu0 0.0
      %338 = vmatprep.subr.mxu0 0.0
      %339 = vmatpush1.msra.mxu0 0.0
      %340 = vmatprep.subr.mxu0 0.0
      %341 = vmatpush1.msra.mxu0 0.0
      %342 = vmatprep.subr.mxu0 0.0
      %343 = vmatpush1.msra.mxu0 0.0
      %344 = vmatprep.subr.mxu0 0.0
      %345 = vmatpush1.msra.mxu0 0.0
      %346 = vmatprep.subr.mxu0 0.0
      %347 = vmatpush1.msra.mxu0 0.0
      %348 = vmatprep.subr.mxu0 0.0
      %349 = vmatpush1.msra.mxu0 0.0
      %350 = vmatprep.subr.mxu0 0.0
      %351 = vmatpush1.msra.mxu0 0.0
      %352 = vmatprep.subr.mxu0 0.0
      %353 = vmatpush1.msra.mxu0 %v220
      %354 = vmatprep.subr.mxu0 0.0
      %355 = vmatpush1.msra.mxu0 %v219
      %356 = vmatprep.subr.mxu0 0.0
      %357 = vmatpush1.msra.mxu0 %v218
      %358 = vmatprep.subr.mxu0 0.0
      %359 = vmatpush1.msra.mxu0 %v217
      %360 = vmatprep.subr.mxu0 0.0
      %361 = vmatpush1.msra.mxu0 %v216
      %362 = vmatprep.subr.mxu0 0.0
      %363 = vmatpush1.msra.mxu0 %v215
      %364 = vmatprep.subr.mxu0 0.0
      %365 = vmatpush1.msra.mxu0 %v214
      %366 = vmatprep.subr.mxu0 0.0
      %367 = vmatpush1.msra.mxu0 %v213
      %368 = vmatprep.subr.mxu0 0.0
      %369 = vmatpush2.msra.mxu0 0.0
      %370 = vmatprep.subr.mxu0 0.0
      %371 = vmatpush2.msra.mxu0 0.0
      %372 = vmatprep.subr.mxu0 0.0
      %373 = vmatpush2.msra.mxu0 0.0
      %374 = vmatprep.subr.mxu0 0.0
      %375 = vmatpush2.msra.mxu0 0.0
      %376 = vmatprep.subr.mxu0 0.0
      %377 = vmatpush2.msra.mxu0 0.0
      %378 = vmatprep.subr.mxu0 0.0
      %379 = vmatpush2.msra.mxu0 0.0
      %380 = vmatprep.subr.mxu0 0.0
      %381 = vmatpush2.msra.mxu0 0.0
      %382 = vmatprep.subr.mxu0 0.0
      %383 = vmatpush2.msra.mxu0 0.0
      %384 = vmatprep.subr.mxu0 0.0
      %385 = vmatpush2.msra.mxu0 0.0
      %386 = vmatprep.subr.mxu0 0.0
      %387 = vmatpush2.msra.mxu0 0.0
      %388 = vmatprep.subr.mxu0 0.0
      %389 = vmatpush2.msra.mxu0 0.0
      %390 = vmatprep.subr.mxu0 0.0
      %391 = vmatpush2.msra.mxu0 0.0
      %392 = vmatprep.subr.mxu0 0.0
      %393 = vmatpush2.msra.mxu0 0.0
      %394 = vmatprep.subr.mxu0 0.0
      %395 = vmatpush2.msra.mxu0 0.0
      %396 = vmatprep.subr.mxu0 0.0
      %397 = vmatpush2.msra.mxu0 0.0
      %398 = vmatprep.subr.mxu0 0.0
      %399 = vmatpush2.msra.mxu0 0.0
      %400 = vmatprep.mubr.f32.mxu0 0.0
      %401 = vmatmul.mubr.f32.gmra.mxu0 %v334
      %v402 = vpop.f32.mrf.mxu0
      %v403 = vadd.f32 0.0, %v402
      %v404 = vpop.f32.mrf.mxu0
      %405 = vdwg.mxu0
      %v406 = vmax.f32 %v403, 0.0
      %v407 = vld [vmem:[%s2] sm:$0xf]
      %vm408 = vcmask 31744
      %v410 = vsel %vm408, %v406, 0
      %vm412 = vcmask 1043456
      %v414 = vsel %vm412, %v407, 0
      %416 = vmatprep.subr.mxu0 0.0
      %417 = vmatpush1.msra.mxu0 0.0
      %418 = vmatprep.subr.mxu0 0.0
      %419 = vmatpush1.msra.mxu0 0.0
      %420 = vmatprep.subr.mxu0 0.0
      %421 = vmatpush1.msra.mxu0 0.0
      %422 = vmatprep.subr.mxu0 0.0
      %423 = vmatpush1.msra.mxu0 0.0
      %424 = vmatprep.subr.mxu0 0.0
      %425 = vmatpush1.msra.mxu0 0.0
      %426 = vmatprep.subr.mxu0 0.0
      %427 = vmatpush1.msra.mxu0 0.0
      %428 = vmatprep.subr.mxu0 0.0
      %429 = vmatpush1.msra.mxu0 0.0
      %430 = vmatprep.subr.mxu0 0.0
      %431 = vmatpush1.msra.mxu0 0.0
      %432 = vmatprep.subr.mxu0 0.0
      %433 = vmatpush1.msra.mxu0 0.0
      %434 = vmatprep.subr.mxu0 0.0
      %435 = vmatpush1.msra.mxu0 0.0
      %436 = vmatprep.subr.mxu0 0.0
      %437 = vmatpush1.msra.mxu0 0.0
      %438 = vmatprep.subr.mxu0 0.0
      %439 = vmatpush1.msra.mxu0 0.0
      %440 = vmatprep.subr.mxu0 0.0
      %441 = vmatpush1.msra.mxu0 0.0
      %442 = vmatprep.subr.mxu0 0.0
      %443 = vmatpush1.msra.mxu0 0.0
      %444 = vmatprep.subr.mxu0 0.0
      %445 = vmatpush1.msra.mxu0 0.0
      %446 = vmatprep.subr.mxu0 0.0
      %447 = vmatpush1.msra.mxu0 %v414
      %448 = vmatprep.subr.mxu0 0.0
      %449 = vmatpush2.msra.mxu0 0.0
      %450 = vmatprep.subr.mxu0 0.0
      %451 = vmatpush2.msra.mxu0 0.0
      %452 = vmatprep.subr.mxu0 0.0
      %453 = vmatpush2.msra.mxu0 0.0
      %454 = vmatprep.subr.mxu0 0.0
      %455 = vmatpush2.msra.mxu0 0.0
      %456 = vmatprep.subr.mxu0 0.0
      %457 = vmatpush2.msra.mxu0 0.0
      %458 = vmatprep.subr.mxu0 0.0
      %459 = vmatpush2.msra.mxu0 0.0
      %460 = vmatprep.subr.mxu0 0.0
      %461 = vmatpush2.msra.mxu0 0.0
      %462 = vmatprep.subr.mxu0 0.0
      %463 = vmatpush2.msra.mxu0 0.0
      %464 = vmatprep.subr.mxu0 0.0
      %465 = vmatpush2.msra.mxu0 0.0
      %466 = vmatprep.subr.mxu0 0.0
      %467 = vmatpush2.msra.mxu0 0.0
      %468 = vmatprep.subr.mxu0 0.0
      %469 = vmatpush2.msra.mxu0 0.0
      %470 = vmatprep.subr.mxu0 0.0
      %471 = vmatpush2.msra.mxu0 0.0
      %472 = vmatprep.subr.mxu0 0.0
      %473 = vmatpush2.msra.mxu0 0.0
      %474 = vmatprep.subr.mxu0 0.0
      %475 = vmatpush2.msra.mxu0 0.0
      %476 = vmatprep.subr.mxu0 0.0
      %477 = vmatpush2.msra.mxu0 0.0
      %478 = vmatprep.subr.mxu0 0.0
      %479 = vmatpush2.msra.mxu0 0.0
      %480 = vmatprep.mubr.f32.mxu0 0.0
      %481 = vmatmul.mubr.f32.gmra.mxu0 %v410
      %v482 = vpop.f32.mrf.mxu0
      %v483 = vadd.f32 0.0, %v482
      %v484 = vpop.f32.mrf.mxu0
      %485 = vdwg.mxu0
      %v486 = vxor.u32 %v483, 2147483648
      %v487 = vmul.f32 %v486, 1.442695
      %v488 = vpow.pop %v487
      %v489 = vadd.f32 %v488, 1.0
      %v490 = vrcp.pop %v489
      %v491 = vmul.f32 1.0, %v490
      %vm492 = vcmask 517120
      %493 = vst.msk [vmem:[#allocation6] sm:$0x3] %vm492, %v491
    $region25: #{tpu_custom_call.1} parent=1 // pred_fallthru
      _
    // Predicated region
    $region26: #{tpu_custom_call.1} parent=1 // pred_check
      _
    $region27: #{tpu_custom_call.1} parent=1 // pred_check_branch
      %495 = sbr.rel (0) target = $region29
    $region28: #{tpu_custom_call.1} parent=1 // pred_region
      %s497 = ssub.s32 32, 32
      %498 = vsyncadd [#allocation5], %s497
      %s500 = sshll.u32 [#allocation6], 4
      %s501 = int_to_ptr.vmem [resolvable:$true] %s500
      %503 = dma.vmem_to_hbm [thread:$0]  %s501, 32, %s3, [#allocation5]
    $region29: #{tpu_custom_call.1} parent=1 // pred_fallthru
      _
    // Predicated region
    $region30: #{tpu_custom_call.1} parent=1 // pred_check
      _
    $region31: #{tpu_custom_call.1} parent=1 // pred_check_branch
      %505 = sbr.rel (0) target = $region33
    $region32: #{tpu_custom_call.1} parent=1 // pred_region
      %506 = dma.done [#allocation5], 32
    $region33: #{tpu_custom_call.1} parent=1 // pred_fallthru
      _
    %507 = vsyncpa [#allocation4], 1
    %508 = vsyncpa [#allocation5], 1

</llo_original>
